<compile_context>
chip_gen: v7x
topology: tpu7x:2x2x1
jax: 0.10.0
libtpu: 0.0.40
codegen_flags: <defaults>
</compile_context>

<pallas_src>
import functools

import jax
import jax.numpy as jnp
from jax import lax
from jax.experimental import pallas as pl
from jax.experimental.pallas import tpu as pltpu

LANE = 128
SUBLANE = 8


def _round_up(x, m):
    return (x + m - 1) // m * m


# -----------------------------------------------------------------------------
# Pallas kernel: one (batch b, L-tile j) step of
#   conv1 -> chomp -> relu -> conv2 -> chomp -> relu -> (+ residual) -> relu
# -----------------------------------------------------------------------------
def _temporal_block_kernel(x_ref, w1h_ref, w1d_ref, b1_ref, w2_ref, b2_ref,
                           bd_ref, o_ref, xcar_ref, hcar_ref,
                           *, K, dilation, pad):
    T = x_ref.shape[0]                 # tile_L
    Cout_p = o_ref.shape[-1]
    j = pl.program_id(1)

    # Reset the causal-history carries at the start of every sequence.
    @pl.when(j == 0)
    def _():
        xcar_ref[...] = jnp.zeros_like(xcar_ref)
        hcar_ref[...] = jnp.zeros_like(hcar_ref)

    x_t = x_ref[...]                                            # (T, Cin)

    # ---- conv1 last tap (aligned with x_t since pad == (K-1)*dilation) fused
    #      with the 1x1 downsample: one N = 2*Cout_p matmul (fills 256-wide MXU)
    wide = jnp.dot(x_t, w1d_ref[...], preferred_element_type=jnp.float32)
    acc1 = wide[:, :Cout_p]                                     # (T, Cout_p) f32
    res = wide[:, Cout_p:] + bd_ref[...]                        # (T, Cout_p) f32

    # ---- conv1 remaining K-1 dilated taps, per-tap MXU accumulation ----
    if pad > 0:
        xcat = jnp.concatenate([xcar_ref[...], x_t], axis=0)    # (T+pad, Cin)
    else:
        xcat = x_t
    for k in range(K - 1):
        acc1 = acc1 + jnp.dot(xcat[k * dilation:k * dilation + T, :],
                              w1h_ref[k], preferred_element_type=jnp.float32)
    h1 = jnp.maximum(acc1 + b1_ref[...], 0.0)                   # (T, Cout_p) f32

    # ---- conv2 (dilated, causal) + ReLU, per-tap accumulation ----
    h1c = h1.astype(hcar_ref.dtype)
    if pad > 0:
        hcat = jnp.concatenate([hcar_ref[...], h1c], axis=0)    # (T+pad, Cout_p)
    else:
        hcat = h1c
    acc2 = jnp.dot(h1c, w2_ref[K - 1], preferred_element_type=jnp.float32)
    for k in range(K - 1):
        acc2 = acc2 + jnp.dot(hcat[k * dilation:k * dilation + T, :],
                              w2_ref[k], preferred_element_type=jnp.float32)
    out = jnp.maximum(acc2 + b2_ref[...], 0.0)

    # ---- residual add + final ReLU, lane-dense store in compute dtype ----
    o_ref[...] = jnp.maximum(out + res, 0.0).astype(o_ref.dtype)

    # ---- carry the last `pad` rows of x and h1 for the next L-tile ----
    if pad > 0:
        xcar_ref[...] = xcat[T:, :]
        hcar_ref[...] = hcat[T:, :]


# -----------------------------------------------------------------------------
# Wrapper: weight-norm materialization, layout conversion, pallas_call
# -----------------------------------------------------------------------------
def temporal_block_forward(x, params, *, kernel_size, dilation, padding,
                           stride=1, tile_l=512, compute_dtype=jnp.bfloat16,
                           channels_last=False, out_dtype=jnp.float32):
    """x: (B, Cin, L) [default] or (B, L, Cin) if channels_last=True.

    Returns (B, Cout, L) float32 by default, or (B, L, Cout) in compute_dtype
    when channels_last=True (for stacked TCN blocks, no transposes/casts).
    """
    if stride != 1:
        # TODO(synk): the TCN TemporalBlock is only used with stride=1.
        raise NotImplementedError("stride != 1 is not supported")
    K, pad = kernel_size, padding
    if pad != (K - 1) * dilation:
        # Any other padding breaks the residual add in the PyTorch module too
        # (shape mismatch after Chomp1d); only the causal TCN config is valid.
        raise NotImplementedError("padding must equal (kernel_size-1)*dilation")

    if channels_last:
        B, L, Cin = x.shape
        x_nlc = x.astype(compute_dtype)
    else:
        B, Cin, L = x.shape
        x_nlc = jnp.transpose(x, (0, 2, 1)).astype(compute_dtype)

    Cout = params['v1'].shape[0]
    Cout_p = _round_up(Cout, LANE)

    # weight_norm:  w = g * v / ||v||  (norm over dims (1,2), PyTorch dim=0)
    def wn(v, g):
        norm = jnp.sqrt(jnp.sum(v * v, axis=(1, 2), keepdims=True))
        return g[:, None, None] * v / norm

    w1_oik = wn(params['v1'], params['g1'])                     # (Cout, Cin,  K)
    w2_oik = wn(params['v2'], params['g2'])                     # (Cout, Cout, K)

    # conv1, taps 0..K-2: per-tap layout (K-1, Cin, Cout_p).
    w1_kic = jnp.pad(jnp.transpose(w1_oik, (2, 1, 0)),          # (K, Cin, Cout_p)
                     ((0, 0), (0, 0), (0, Cout_p - Cout)))
    if K > 1:
        w1_head = w1_kic[:K - 1].astype(compute_dtype)
    else:
        w1_head = jnp.zeros((1, Cin, Cout_p), compute_dtype)    # never read

    # Residual path: explicit 1x1 downsample, or identity when Cin == Cout.
    if params.get('wd') is not None:
        wd_ic = params['wd'][:, :, 0].T                         # (Cin, Cout)
        bd_c = params['bd']
    else:
        assert Cin == Cout, "identity residual requires n_inputs == n_outputs"
        wd_ic = jnp.eye(Cin, Cout, dtype=jnp.float32)
        bd_c = jnp.zeros((Cout,), jnp.float32)
    wd_icp = jnp.pad(wd_ic, ((0, 0), (0, Cout_p - Cout)))
    # conv1 last tap + residual 1x1 fused into one (Cin, 2*Cout_p) weight.
    w1d = jnp.concatenate([w1_kic[K - 1], wd_icp], axis=1).astype(compute_dtype)

    # conv2: per-tap layout (K, Cout_p, Cout_p).
    w2_kcc = jnp.pad(jnp.transpose(w2_oik, (2, 1, 0)),
                     ((0, 0), (0, Cout_p - Cout), (0, Cout_p - Cout))
                     ).astype(compute_dtype)

    def padb(b):
        return jnp.pad(b, (0, Cout_p - Cout)).reshape(1, Cout_p).astype(jnp.float32)

    b1, b2, bd = padb(params['b1']), padb(params['b2']), padb(bd_c)

    # L tiling (channels stay UNPADDED in HBM).
    tile_l = _round_up(max(SUBLANE, min(tile_l, _round_up(L, SUBLANE))), SUBLANE)
    Lp = _round_up(L, tile_l)
    n_lt = Lp // tile_l
    if Lp > L:
        x_nlc = jnp.pad(x_nlc, ((0, 0), (0, Lp - L), (0, 0)))

    kernel = functools.partial(_temporal_block_kernel,
                               K=K, dilation=dilation, pad=pad)

    cdt = jnp.dtype(compute_dtype).itemsize
    flops = 2 * B * Lp * ((K - 1) * Cin * Cout_p + 2 * Cin * Cout_p
                          + K * Cout_p * Cout_p)
    w_bytes = ((max(K - 1, 1) * Cin + 2 * Cin + K * Cout_p) * Cout_p * cdt
               + 3 * Cout_p * 4)
    bytes_accessed = int(B * Lp * Cin * cdt + w_bytes + B * Lp * Cout_p * cdt)

    # VMEM sizing: double-buffered in/out blocks + weights + carries + f32
    # intermediates headroom; explicit limit, capped at v7x's 64 MiB physical.
    vmem_est = (2 * tile_l * (Cin + Cout_p) * cdt + w_bytes
                + max(pad, 1) * (Cin + Cout_p) * cdt
                + 8 * tile_l * Cout_p * 4)
    vmem_limit = int(min(max(2 * vmem_est, 32 * 1024 * 1024), 64 * 1024 * 1024))

    y_nlc = pl.pallas_call(
        kernel,
        out_shape=jax.ShapeDtypeStruct((B, Lp, Cout_p), compute_dtype),
        grid=(B, n_lt),
        in_specs=[
            pl.BlockSpec((None, tile_l, Cin), lambda b, j: (b, j, 0)),
            pl.BlockSpec(w1_head.shape, lambda b, j: (0, 0, 0)),
            pl.BlockSpec(w1d.shape, lambda b, j: (0, 0)),
            pl.BlockSpec((1, Cout_p), lambda b, j: (0, 0)),
            pl.BlockSpec(w2_kcc.shape, lambda b, j: (0, 0, 0)),
            pl.BlockSpec((1, Cout_p), lambda b, j: (0, 0)),
            pl.BlockSpec((1, Cout_p), lambda b, j: (0, 0)),
        ],
        out_specs=pl.BlockSpec((None, tile_l, Cout_p), lambda b, j: (b, j, 0)),
        scratch_shapes=[
            pltpu.VMEM((max(pad, 1), Cin), compute_dtype),      # x history carry
            pltpu.VMEM((max(pad, 1), Cout_p), compute_dtype),   # h1 history carry
        ],
        compiler_params=pltpu.CompilerParams(
            dimension_semantics=("parallel", "arbitrary"),
            vmem_limit_bytes=vmem_limit),
        cost_estimate=pl.CostEstimate(flops=flops, transcendentals=0,
                                      bytes_accessed=bytes_accessed),
    )(x_nlc, w1_head, w1d, b1, w2_kcc, b2, bd)

    y = y_nlc[:, :L, :Cout]
    if channels_last:
        return y                                  # (B, L, Cout), compute_dtype
    return jnp.transpose(y, (0, 2, 1)).astype(out_dtype)         # (B, Cout, L)


# -----------------------------------------------------------------------------
# Pure-JAX reference (independent: lax.conv_general_dilated) for checking
# -----------------------------------------------------------------------------
def reference_forward(x_ncl, params, *, kernel_size, dilation, padding):
    def wn(v, g):
        norm = jnp.sqrt(jnp.sum(v * v, axis=(1, 2), keepdims=True))
        return g[:, None, None] * v / norm

    def conv1d(x, w, b, pad, dil):
        y = lax.conv_general_dilated(
            x, w, window_strides=(1,), padding=[(pad, pad)],
            rhs_dilation=(dil,),
            dimension_numbers=('NCH', 'OIH', 'NCH'))
        return y + b[None, :, None]

    w1 = wn(params['v1'], params['g1'])
    w2 = wn(params['v2'], params['g2'])

    h = conv1d(x_ncl, w1, params['b1'], padding, dilation)
    h = h[:, :, :-padding] if padding > 0 else h        # Chomp1d
    h = jnp.maximum(h, 0.0)
    h = conv1d(h, w2, params['b2'], padding, dilation)
    h = h[:, :, :-padding] if padding > 0 else h        # Chomp1d
    h = jnp.maximum(h, 0.0)
    if params.get('wd') is not None:
        res = conv1d(x_ncl, params['wd'], params['bd'], 0, 1)
    else:
        res = x_ncl                                      # identity residual
    return jnp.maximum(h + res, 0.0)


# -----------------------------------------------------------------------------
if __name__ == "__main__":
    key = jax.random.PRNGKey(0)
    ks = jax.random.split(key, 16)

    K, stride, dilation = 3, 1, 2
    padding = (K - 1) * dilation                 # causal TCN padding = 4

    # --- Case 1: n_inputs != n_outputs (1x1 downsample in the residual path) --
    B, Cin, Cout, L = 2, 4, 8, 64
    params = {
        'v1': 0.01 * jax.random.normal(ks[0], (Cout, Cin, K), jnp.float32),
        'g1': 1.0 + 0.1 * jax.random.normal(ks[1], (Cout,), jnp.float32),
        'b1': 0.1 * jax.random.normal(ks[2], (Cout,), jnp.float32),
        'v2': 0.01 * jax.random.normal(ks[3], (Cout, Cout, K), jnp.float32),
        'g2': 1.0 + 0.1 * jax.random.normal(ks[4], (Cout,), jnp.float32),
        'b2': 0.1 * jax.random.normal(ks[5], (Cout,), jnp.float32),
        'wd': 0.01 * jax.random.normal(ks[6], (Cout, Cin, 1), jnp.float32),
        'bd': 0.1 * jax.random.normal(ks[7], (Cout,), jnp.float32),
    }
    x = jax.random.normal(ks[8], (B, Cin, L), jnp.float32)

    y_ref = jax.block_until_ready(
        reference_forward(x, params, kernel_size=K, dilation=dilation,
                          padding=padding))

    # f32 MXU path, small L-tiles -> tight check of tiling / halo carry.
    y32 = jax.block_until_ready(
        temporal_block_forward(x, params, kernel_size=K, dilation=dilation,
                               padding=padding, stride=stride, tile_l=16,
                               compute_dtype=jnp.float32))
    assert y32.shape == (B, Cout, L), y32.shape
    assert jnp.allclose(y32, y_ref, atol=2e-2, rtol=2e-2), float(
        jnp.max(jnp.abs(y32 - y_ref)))

    # bf16 MXU path (perf default): large L-tile, bf16 output stream.
    ybf = jax.block_until_ready(
        temporal_block_forward(x, params, kernel_size=K, dilation=dilation,
                               padding=padding, stride=stride))
    assert ybf.shape == (B, Cout, L), ybf.shape
    assert jnp.allclose(ybf, y_ref, atol=1e-1, rtol=1e-1), float(
        jnp.max(jnp.abs(ybf - y_ref)))

    # channels-last (NLC) I/O path for stacked TCN blocks (no transposes).
    x_nlc = jnp.transpose(x, (0, 2, 1))
    ycl = jax.block_until_ready(
        temporal_block_forward(x_nlc, params, kernel_size=K, dilation=dilation,
                               padding=padding, stride=stride,
                               channels_last=True))
    assert ycl.shape == (B, L, Cout), ycl.shape
    assert jnp.allclose(jnp.transpose(ycl.astype(jnp.float32), (0, 2, 1)),
                        y_ref, atol=1e-1, rtol=1e-1)

    # --- Case 2: n_inputs == n_outputs (identity residual, no downsample) -----
    Cin2 = Cout2 = 8
    params2 = {
        'v1': 0.01 * jax.random.normal(ks[9], (Cout2, Cin2, K), jnp.float32),
        'g1': 1.0 + 0.1 * jax.random.normal(ks[10], (Cout2,), jnp.float32),
        'b1': 0.1 * jax.random.normal(ks[11], (Cout2,), jnp.float32),
        'v2': 0.01 * jax.random.normal(ks[12], (Cout2, Cout2, K), jnp.float32),
        'g2': 1.0 + 0.1 * jax.random.normal(ks[13], (Cout2,), jnp.float32),
        'b2': 0.1 * jax.random.normal(ks[14], (Cout2,), jnp.float32),
        'wd': None, 'bd': None,
    }
    x2 = jax.random.normal(ks[15], (B, Cin2, L), jnp.float32)
    y2_ref = jax.block_until_ready(
        reference_forward(x2, params2, kernel_size=K, dilation=dilation,
                          padding=padding))
    y2 = jax.block_until_ready(
        temporal_block_forward(x2, params2, kernel_size=K, dilation=dilation,
                               padding=padding, stride=stride, tile_l=16,
                               compute_dtype=jnp.float32))
    assert y2.shape == (B, Cout2, L), y2.shape
    assert jnp.allclose(y2, y2_ref, atol=2e-2, rtol=2e-2), float(
        jnp.max(jnp.abs(y2 - y2_ref)))

    print("KERNEL_OK")
</pallas_src>

<mosaic_0001>
module attributes {stable_mosaic.version = 11 : i64} {
  func.func @_temporal_block_kernel(%arg0: i32, %arg1: i32, %arg2: memref<1x16x4xf32, #tpu.memory_space<vmem>>, %arg3: memref<2x4x128xf32, #tpu.memory_space<vmem>>, %arg4: memref<4x256xf32, #tpu.memory_space<vmem>>, %arg5: memref<1x128xf32, #tpu.memory_space<vmem>>, %arg6: memref<3x128x128xf32, #tpu.memory_space<vmem>>, %arg7: memref<1x128xf32, #tpu.memory_space<vmem>>, %arg8: memref<1x128xf32, #tpu.memory_space<vmem>>, %arg9: memref<1x16x128xf32, #tpu.memory_space<vmem>>, %arg10: memref<4x4xf32, #tpu.memory_space<vmem>>, %arg11: memref<4x128xf32, #tpu.memory_space<vmem>>) attributes {dimension_semantics = [#tpu.dimension_semantics<parallel>, #tpu.dimension_semantics<arbitrary>], iteration_bounds = array<i64: 2, 4>, scalar_prefetch = 0 : i64, scratch_operands = 2 : i64, tpu.core_type = #tpu.core_type<tc>, window_params = [{transform_indices = @transform_0, window_bounds = array<i64: 1, 16, 4>}, {pipeline_mode = #tpu.pipeline_mode<synchronous>, transform_indices = @transform_1, window_bounds = array<i64: 2, 4, 128>}, {pipeline_mode = #tpu.pipeline_mode<synchronous>, transform_indices = @transform_2, window_bounds = array<i64: 4, 256>}, {pipeline_mode = #tpu.pipeline_mode<synchronous>, transform_indices = @transform_3, window_bounds = array<i64: 1, 128>}, {pipeline_mode = #tpu.pipeline_mode<synchronous>, transform_indices = @transform_4, window_bounds = array<i64: 3, 128, 128>}, {pipeline_mode = #tpu.pipeline_mode<synchronous>, transform_indices = @transform_5, window_bounds = array<i64: 1, 128>}, {pipeline_mode = #tpu.pipeline_mode<synchronous>, transform_indices = @transform_6, window_bounds = array<i64: 1, 128>}, {transform_indices = @transform_7, window_bounds = array<i64: 1, 16, 128>}]} {
    %c0_i32 = arith.constant 0 : i32
    %0 = arith.cmpi eq, %arg1, %c0_i32 : i32
    %1 = arith.extui %0 : i1 to i32
    %c0_i32_0 = arith.constant 0 : i32
    %2 = arith.cmpi ne, %1, %c0_i32_0 : i32
    scf.if %2 {
      %cst_43 = arith.constant 0.000000e+00 : f32
      %59 = vector.broadcast %cst_43 : f32 to vector<4x4xf32>
      %c0_44 = arith.constant 0 : index
      %c0_45 = arith.constant 0 : index
      %60 = vector.load %arg10[%c0_44, %c0_45] : memref<4x4xf32, #tpu.memory_space<vmem>>, vector<4x4xf32>
      tpu.vector_store %arg10[%c0_44, %c0_45], %59 {strides = array<i32>} : memref<4x4xf32, #tpu.memory_space<vmem>>, vector<4x4xf32>,
      %cst_46 = arith.constant 0.000000e+00 : f32
      %61 = vector.broadcast %cst_46 : f32 to vector<4x128xf32>
      %c0_47 = arith.constant 0 : index
      %c0_48 = arith.constant 0 : index
      %62 = vector.load %arg11[%c0_47, %c0_48] : memref<4x128xf32, #tpu.memory_space<vmem>>, vector<4x128xf32>
      tpu.vector_store %arg11[%c0_47, %c0_48], %61 {strides = array<i32>} : memref<4x128xf32, #tpu.memory_space<vmem>>, vector<4x128xf32>,
    } else {
    }
    %c0 = arith.constant 0 : index
    %c0_1 = arith.constant 0 : index
    %c0_2 = arith.constant 0 : index
    %3 = vector.load %arg2[%c0, %c0_1, %c0_2] : memref<1x16x4xf32, #tpu.memory_space<vmem>>, vector<1x16x4xf32>
    %4 = vector.shape_cast %3 : vector<1x16x4xf32> to vector<16x4xf32>
    %c0_3 = arith.constant 0 : index
    %c0_4 = arith.constant 0 : index
    %5 = vector.load %arg4[%c0_3, %c0_4] : memref<4x256xf32, #tpu.memory_space<vmem>>, vector<4x256xf32>
    %cst = arith.constant dense<0.000000e+00> : vector<16x256xf32>
    %6 = tpu.matmul %4, %5, %cst {dimension_numbers = #tpu.dot_dimension_numbers<[1], [0], [0], [1], [0, 0, 1, 1], [], []>} : vector<16x4xf32>, vector<4x256xf32>, vector<16x256xf32> -> vector<16x256xf32>
    %7 = vector.extract_strided_slice %6 {offsets = [0, 0], sizes = [16, 128], strides = [1, 1]} : vector<16x256xf32> to vector<16x128xf32>
    %8 = vector.extract_strided_slice %6 {offsets = [0, 128], sizes = [16, 128], strides = [1, 1]} : vector<16x256xf32> to vector<16x128xf32>
    %c0_5 = arith.constant 0 : index
    %c0_6 = arith.constant 0 : index
    %9 = vector.load %arg8[%c0_5, %c0_6] : memref<1x128xf32, #tpu.memory_space<vmem>>, vector<1x128xf32>
    %10 = vector.broadcast %9 : vector<1x128xf32> to vector<16x128xf32>
    %11 = arith.addf %8, %10 : vector<16x128xf32>
    %c0_7 = arith.constant 0 : index
    %c0_8 = arith.constant 0 : index
    %12 = vector.load %arg10[%c0_7, %c0_8] : memref<4x4xf32, #tpu.memory_space<vmem>>, vector<4x4xf32>
    %13 = tpu.concatenate %12, %4 in 0 : vector<4x4xf32>, vector<16x4xf32> -> vector<20x4xf32>
    %14 = vector.extract_strided_slice %13 {offsets = [0, 0], sizes = [16, 4], strides = [1, 1]} : vector<20x4xf32> to vector<16x4xf32>
    %c0_9 = arith.constant 0 : index
    %c0_10 = arith.constant 0 : index
    %c0_11 = arith.constant 0 : index
    %15 = vector.load %arg3[%c0_9, %c0_10, %c0_11] : memref<2x4x128xf32, #tpu.memory_space<vmem>>, vector<1x4x128xf32>
    %16 = vector.shape_cast %15 : vector<1x4x128xf32> to vector<4x128xf32>
    %cst_12 = arith.constant dense<0.000000e+00> : vector<16x128xf32>
    %17 = tpu.matmul %14, %16, %cst_12 {dimension_numbers = #tpu.dot_dimension_numbers<[1], [0], [0], [1], [0, 0, 1, 1], [], []>} : vector<16x4xf32>, vector<4x128xf32>, vector<16x128xf32> -> vector<16x128xf32>
    %18 = arith.addf %7, %17 : vector<16x128xf32>
    %19 = vector.extract_strided_slice %13 {offsets = [2, 0], sizes = [16, 4], strides = [1, 1]} : vector<20x4xf32> to vector<16x4xf32>
    %c1 = arith.constant 1 : index
    %c0_13 = arith.constant 0 : index
    %c0_14 = arith.constant 0 : index
    %20 = vector.load %arg3[%c1, %c0_13, %c0_14] : memref<2x4x128xf32, #tpu.memory_space<vmem>>, vector<1x4x128xf32>
    %21 = vector.shape_cast %20 : vector<1x4x128xf32> to vector<4x128xf32>
    %cst_15 = arith.constant dense<0.000000e+00> : vector<16x128xf32>
    %22 = tpu.matmul %19, %21, %cst_15 {dimension_numbers = #tpu.dot_dimension_numbers<[1], [0], [0], [1], [0, 0, 1, 1], [], []>} : vector<16x4xf32>, vector<4x128xf32>, vector<16x128xf32> -> vector<16x128xf32>
    %23 = arith.addf %18, %22 : vector<16x128xf32>
    %c0_16 = arith.constant 0 : index
    %c0_17 = arith.constant 0 : index
    %24 = vector.load %arg5[%c0_16, %c0_17] : memref<1x128xf32, #tpu.memory_space<vmem>>, vector<1x128xf32>
    %25 = vector.broadcast %24 : vector<1x128xf32> to vector<16x128xf32>
    %26 = arith.addf %23, %25 : vector<16x128xf32>
    %cst_18 = arith.constant 0.000000e+00 : f32
    %27 = vector.broadcast %cst_18 : f32 to vector<16x128xf32>
    %28 = arith.maximumf %26, %27 : vector<16x128xf32>
    %c0_19 = arith.constant 0 : index
    %c0_20 = arith.constant 0 : index
    %29 = vector.load %arg11[%c0_19, %c0_20] : memref<4x128xf32, #tpu.memory_space<vmem>>, vector<4x128xf32>
    %30 = tpu.concatenate %29, %28 in 0 : vector<4x128xf32>, vector<16x128xf32> -> vector<20x128xf32>
    %c2 = arith.constant 2 : index
    %c0_21 = arith.constant 0 : index
    %c0_22 = arith.constant 0 : index
    %31 = vector.load %arg6[%c2, %c0_21, %c0_22] : memref<3x128x128xf32, #tpu.memory_space<vmem>>, vector<1x128x128xf32>
    %32 = vector.shape_cast %31 : vector<1x128x128xf32> to vector<128x128xf32>
    %cst_23 = arith.constant dense<0.000000e+00> : vector<16x128xf32>
    %33 = tpu.matmul %28, %32, %cst_23 {dimension_numbers = #tpu.dot_dimension_numbers<[1], [0], [0], [1], [0, 0, 1, 1], [], []>} : vector<16x128xf32>, vector<128x128xf32>, vector<16x128xf32> -> vector<16x128xf32>
    %34 = vector.extract_strided_slice %30 {offsets = [0, 0], sizes = [16, 128], strides = [1, 1]} : vector<20x128xf32> to vector<16x128xf32>
    %c0_24 = arith.constant 0 : index
    %c0_25 = arith.constant 0 : index
    %c0_26 = arith.constant 0 : index
    %35 = vector.load %arg6[%c0_24, %c0_25, %c0_26] : memref<3x128x128xf32, #tpu.memory_space<vmem>>, vector<1x128x128xf32>
    %36 = vector.shape_cast %35 : vector<1x128x128xf32> to vector<128x128xf32>
    %cst_27 = arith.constant dense<0.000000e+00> : vector<16x128xf32>
    %37 = tpu.matmul %34, %36, %cst_27 {dimension_numbers = #tpu.dot_dimension_numbers<[1], [0], [0], [1], [0, 0, 1, 1], [], []>} : vector<16x128xf32>, vector<128x128xf32>, vector<16x128xf32> -> vector<16x128xf32>
    %38 = arith.addf %33, %37 : vector<16x128xf32>
    %39 = vector.extract_strided_slice %30 {offsets = [2, 0], sizes = [16, 128], strides = [1, 1]} : vector<20x128xf32> to vector<16x128xf32>
    %c1_28 = arith.constant 1 : index
    %c0_29 = arith.constant 0 : index
    %c0_30 = arith.constant 0 : index
    %40 = vector.load %arg6[%c1_28, %c0_29, %c0_30] : memref<3x128x128xf32, #tpu.memory_space<vmem>>, vector<1x128x128xf32>
    %41 = vector.shape_cast %40 : vector<1x128x128xf32> to vector<128x128xf32>
    %cst_31 = arith.constant dense<0.000000e+00> : vector<16x128xf32>
    %42 = tpu.matmul %39, %41, %cst_31 {dimension_numbers = #tpu.dot_dimension_numbers<[1], [0], [0], [1], [0, 0, 1, 1], [], []>} : vector<16x128xf32>, vector<128x128xf32>, vector<16x128xf32> -> vector<16x128xf32>
    %43 = arith.addf %38, %42 : vector<16x128xf32>
    %c0_32 = arith.constant 0 : index
    %c0_33 = arith.constant 0 : index
    %44 = vector.load %arg7[%c0_32, %c0_33] : memref<1x128xf32, #tpu.memory_space<vmem>>, vector<1x128xf32>
    %45 = vector.broadcast %44 : vector<1x128xf32> to vector<16x128xf32>
    %46 = arith.addf %43, %45 : vector<16x128xf32>
    %cst_34 = arith.constant 0.000000e+00 : f32
    %47 = vector.broadcast %cst_34 : f32 to vector<16x128xf32>
    %48 = arith.maximumf %46, %47 : vector<16x128xf32>
    %49 = arith.addf %48, %11 : vector<16x128xf32>
    %cst_35 = arith.constant 0.000000e+00 : f32
    %50 = vector.broadcast %cst_35 : f32 to vector<16x128xf32>
    %51 = arith.maximumf %49, %50 : vector<16x128xf32>
    %c0_36 = arith.constant 0 : index
    %c0_37 = arith.constant 0 : index
    %c0_38 = arith.constant 0 : index
    %52 = vector.load %arg9[%c0_36, %c0_37, %c0_38] : memref<1x16x128xf32, #tpu.memory_space<vmem>>, vector<1x16x128xf32>
    %53 = vector.shape_cast %52 : vector<1x16x128xf32> to vector<16x128xf32>
    %54 = vector.shape_cast %51 : vector<16x128xf32> to vector<1x16x128xf32>
    tpu.vector_store %arg9[%c0_36, %c0_37, %c0_38], %54 {strides = array<i32>} : memref<1x16x128xf32, #tpu.memory_space<vmem>>, vector<1x16x128xf32>,
    %55 = vector.extract_strided_slice %13 {offsets = [16, 0], sizes = [4, 4], strides = [1, 1]} : vector<20x4xf32> to vector<4x4xf32>
    %c0_39 = arith.constant 0 : index
    %c0_40 = arith.constant 0 : index
    %56 = vector.load %arg10[%c0_39, %c0_40] : memref<4x4xf32, #tpu.memory_space<vmem>>, vector<4x4xf32>
    tpu.vector_store %arg10[%c0_39, %c0_40], %55 {strides = array<i32>} : memref<4x4xf32, #tpu.memory_space<vmem>>, vector<4x4xf32>,
    %57 = vector.extract_strided_slice %30 {offsets = [16, 0], sizes = [4, 128], strides = [1, 1]} : vector<20x128xf32> to vector<4x128xf32>
    %c0_41 = arith.constant 0 : index
    %c0_42 = arith.constant 0 : index
    %58 = vector.load %arg11[%c0_41, %c0_42] : memref<4x128xf32, #tpu.memory_space<vmem>>, vector<4x128xf32>
    tpu.vector_store %arg11[%c0_41, %c0_42], %57 {strides = array<i32>} : memref<4x128xf32, #tpu.memory_space<vmem>>, vector<4x128xf32>,
    return
  }
  func.func @transform_0(%arg0: i32, %arg1: i32) -> (i32, i32, i32) {
    %c0_i32 = arith.constant 0 : i32
    %c0_i32_0 = arith.constant 0 : i32
    return %arg0, %arg1, %c0_i32 : i32, i32, i32
  }
  func.func @transform_1(%arg0: i32, %arg1: i32) -> (i32, i32, i32) {
    %c0_i32 = arith.constant 0 : i32
    %c0_i32_0 = arith.constant 0 : i32
    %c0_i32_1 = arith.constant 0 : i32
    %c0_i32_2 = arith.constant 0 : i32
    return %c0_i32, %c0_i32_0, %c0_i32_1 : i32, i32, i32
  }
  func.func @transform_2(%arg0: i32, %arg1: i32) -> (i32, i32) {
    %c0_i32 = arith.constant 0 : i32
    %c0_i32_0 = arith.constant 0 : i32
    %c0_i32_1 = arith.constant 0 : i32
    return %c0_i32, %c0_i32_0 : i32, i32
  }
  func.func @transform_3(%arg0: i32, %arg1: i32) -> (i32, i32) {
    %c0_i32 = arith.constant 0 : i32
    %c0_i32_0 = arith.constant 0 : i32
    %c0_i32_1 = arith.constant 0 : i32
    return %c0_i32, %c0_i32_0 : i32, i32
  }
  func.func @transform_4(%arg0: i32, %arg1: i32) -> (i32, i32, i32) {
    %c0_i32 = arith.constant 0 : i32
    %c0_i32_0 = arith.constant 0 : i32
    %c0_i32_1 = arith.constant 0 : i32
    %c0_i32_2 = arith.constant 0 : i32
    return %c0_i32, %c0_i32_0, %c0_i32_1 : i32, i32, i32
  }
  func.func @transform_5(%arg0: i32, %arg1: i32) -> (i32, i32) {
    %c0_i32 = arith.constant 0 : i32
    %c0_i32_0 = arith.constant 0 : i32
    %c0_i32_1 = arith.constant 0 : i32
    return %c0_i32, %c0_i32_0 : i32, i32
  }
  func.func @transform_6(%arg0: i32, %arg1: i32) -> (i32, i32) {
    %c0_i32 = arith.constant 0 : i32
    %c0_i32_0 = arith.constant 0 : i32
    %c0_i32_1 = arith.constant 0 : i32
    return %c0_i32, %c0_i32_0 : i32, i32
  }
  func.func @transform_7(%arg0: i32, %arg1: i32) -> (i32, i32, i32) {
    %c0_i32 = arith.constant 0 : i32
    %c0_i32_0 = arith.constant 0 : i32
    return %arg0, %arg1, %c0_i32 : i32, i32, i32
  }
}

</mosaic_0001>

<llo_original>
// kernel: tpu_custom_call.1
$region0: #{tpu_custom_call.1}
  #allocation0 [shape = 'u32[]', space=smem, size = 0x4, offset = 0x4, fixed_abs, tag = 'smem constant byte address 0x4 - core index']
  #allocation1 [shape = 'u32[144,128]{1,0:T(1,128)}', space=vmem, size = 0x12000, scoped, tag = 'internal scratch']
  #allocation2 [shape = 'f32[4,4]{1,0:T(4,128)}', space=vmem, size = 0x800, scoped, tag = 'scratch operand']
  #allocation3 [shape = 'f32[4,128]{1,0:T(4,128)}', space=vmem, size = 0x800, scoped, tag = 'scratch operand']
  %s0 = inlined_call_operand.vmem [shape: f32[2,64,4], index: 0, kind: input, shape index: {}]
  %s1 = inlined_call_operand.vmem [shape: f32[2,4,128], index: 1, kind: input, shape index: {}]
  %s2 = inlined_call_operand.vmem [shape: f32[4,256], index: 2, kind: input, shape index: {}]
  %s3 = inlined_call_operand.vmem [shape: f32[1,128], index: 3, kind: input, shape index: {}]
  %s4 = inlined_call_operand.hbm [shape: f32[3,128,128], index: 4, kind: input, shape index: {}]
  %s5 = inlined_call_operand.vmem [shape: f32[1,128], index: 5, kind: input, shape index: {}]
  %s6 = inlined_call_operand.vmem [shape: f32[1,128], index: 6, kind: input, shape index: {}]
  %s7 = inlined_call_operand.hbm [shape: f32[2,64,128], index: 7, kind: output, shape index: {}]
  %s8 = sld [smem:[#allocation0]]
  $region69: #{tpu_custom_call.1} parent=0
    _
  %s10 = ssub.s32 1, %s8
  %s11 = scalar_select 0, %s10, %s8
  $region1: #{tpu_custom_call.1} parent=0
    #allocation4 [shape = 'u8[196608]{0}', space=vmem, size = 0x30000, scoped, tag = 'input window, operand 4, single buffered']
    #allocation5 [shape = 's32[2]{0}', space=sflag, size = 0x8, scoped, tag = 'scoped memory for tpu_custom_call.1']
    #allocation6 [shape = 's32[2]{0}', space=sflag, size = 0x8, scoped, tag = 'scoped memory for tpu_custom_call.1']
    #allocation7 [shape = 'u8[16384]{0}', space=vmem, size = 0x4000, scoped, tag = 'output window, operand 0']
    %12 = vsyncpa [#allocation5], 0
    %13 = vsyncpa [#allocation6], 0
    %s14 = scalar_lea.sflag [#allocation6], 1
    %15 = vsyncpa %s14, 0
    loop: start=0, step=1, limit=10
    $region2: #{tpu_custom_call.1} parent=1 // loop_pre_header
      _
    $region3: #{tpu_custom_call.1} parent=1 // loop_header
      %s17 = sphi 0, %s21
      %p18 = scmp.ge.s32.totalorder %s17, 10
      %s24 = sphi 0, %s36
      %s25 = sphi 0, %s32
      %s26 = sphi 0, %s24
      %s27 = sphi 0, %s25
      %s28 = sphi 0, %s26
      %s29 = sphi 0, %s27
      %s41 = sphi 0, %s43
      %s44 = sphi 0, %s41
      %s45 = sphi 0, %s44
      %s61 = sphi 0, %s45
      %s65 = sphi 0, %s65
      %s67 = sphi 0, %s65
      %s68 = sphi 0, %s67
      %s82 = sphi 0, %s68
      %s86 = sphi 0, %s86
      %s88 = sphi 0, %s86
      %s89 = sphi 0, %s88
      %s103 = sphi 0, %s89
      %s107 = sphi 0, %s107
      %s109 = sphi 0, %s107
      %s110 = sphi 0, %s109
      %s124 = sphi 0, %s110
      %s128 = sphi 0, %s128
      %s130 = sphi 0, %s128
      %s131 = sphi 0, %s130
      %s145 = sphi 0, %s131
      %s149 = sphi 0, %s149
      %s151 = sphi 0, %s149
      %s152 = sphi 0, %s151
      %s166 = sphi 0, %s152
      %s170 = sphi 0, %s170
      %s172 = sphi 0, %s170
      %s173 = sphi 0, %s172
      %s187 = sphi 0, %s173
      %s195 = sphi 0, %s197
      %s198 = sphi 0, %s195
      %s199 = sphi 0, %s198
      %s215 = sphi 0, %s199
    $region4: #{tpu_custom_call.1} parent=1 // loop_header_branch
      %20 = sbr.rel (%p18) target = $region8
    $region5: #{tpu_custom_call.1} parent=1 // loop_body
      %s22 = ssub.s32 %s17, 1
      %s23 = ssub.s32 %s17, 2
      %s30 = sadd.s32 1, %s25
      %p31 = scmp.ge.s32.totalorder %s30, 4
      %s32 = scalar_select %p31, 0, %s30
      %s33 = sadd.s32 1, %s24
      %s34 = scalar_select %p31, %s33, %s24
      %p35 = scmp.ge.s32.totalorder %s34, 2
      %s36 = scalar_select %p35, 0, %s34
      %s37 = ssub.s32 %s24, %s36
      %s38 = ssub.s32 %s25, %s32
      %s39 = sor.u32 %s37, %s38
      %p40 = scmp.eq.s32.totalorder %s39, 0
      %s42 = sadd.s32 %s41, 1
      %s43 = scalar_select %p40, %s41, %s42
      %p46 = pneg %p40
      %p47 = scmp.eq.s32.totalorder %s17, 7
      %p48 = por %p46, %p47
      %p49 = scmp.ne.s32.totalorder %s41, %s44
      %p50 = scmp.eq.s32.totalorder %s17, 0
      %p51 = por %p49, %p50
      %p52 = scmp.ne.s32.totalorder %s41, %s44
      %p53 = scmp.eq.s32.totalorder %s22, 7
      %p54 = por %p52, %p53
      %p55 = scmp.ne.s32.totalorder %s44, %s45
      %p56 = scmp.eq.s32.totalorder %s22, 0
      %p57 = por %p55, %p56
      %p58 = scmp.ne.s32.totalorder %s44, %s45
      %p59 = scmp.eq.s32.totalorder %s23, 7
      %p60 = por %p58, %p59
      %p62 = scmp.ne.s32.totalorder %s45, %s61
      %p63 = scmp.eq.s32.totalorder %s23, 0
      %p64 = por %p62, %p63
      %s66 = sadd.s32 %s65, 1
      %p69 = scmp.eq.s32.totalorder %s17, 7
      %p70 = scmp.ne.s32.totalorder %s65, %s67
      %p71 = scmp.eq.s32.totalorder %s17, 0
      %p72 = por %p70, %p71
      %p73 = scmp.ne.s32.totalorder %s65, %s67
      %p74 = scmp.eq.s32.totalorder %s22, 7
      %p75 = por %p73, %p74
      %p76 = scmp.ne.s32.totalorder %s67, %s68
      %p77 = scmp.eq.s32.totalorder %s22, 0
      %p78 = por %p76, %p77
      %p79 = scmp.ne.s32.totalorder %s67, %s68
      %p80 = scmp.eq.s32.totalorder %s23, 7
      %p81 = por %p79, %p80
      %p83 = scmp.ne.s32.totalorder %s68, %s82
      %p84 = scmp.eq.s32.totalorder %s23, 0
      %p85 = por %p83, %p84
      %s87 = sadd.s32 %s86, 1
      %p90 = scmp.eq.s32.totalorder %s17, 7
      %p91 = scmp.ne.s32.totalorder %s86, %s88
      %p92 = scmp.eq.s32.totalorder %s17, 0
      %p93 = por %p91, %p92
      %p94 = scmp.ne.s32.totalorder %s86, %s88
      %p95 = scmp.eq.s32.totalorder %s22, 7
      %p96 = por %p94, %p95
      %p97 = scmp.ne.s32.totalorder %s88, %s89
      %p98 = scmp.eq.s32.totalorder %s22, 0
      %p99 = por %p97, %p98
      %p100 = scmp.ne.s32.totalorder %s88, %s89
      %p101 = scmp.eq.s32.totalorder %s23, 7
      %p102 = por %p100, %p101
      %p104 = scmp.ne.s32.totalorder %s89, %s103
      %p105 = scmp.eq.s32.totalorder %s23, 0
      %p106 = por %p104, %p105
      %s108 = sadd.s32 %s107, 1
      %p111 = scmp.eq.s32.totalorder %s17, 7
      %p112 = scmp.ne.s32.totalorder %s107, %s109
      %p113 = scmp.eq.s32.totalorder %s17, 0
      %p114 = por %p112, %p113
      %p115 = scmp.ne.s32.totalorder %s107, %s109
      %p116 = scmp.eq.s32.totalorder %s22, 7
      %p117 = por %p115, %p116
      %p118 = scmp.ne.s32.totalorder %s109, %s110
      %p119 = scmp.eq.s32.totalorder %s22, 0
      %p120 = por %p118, %p119
      %p121 = scmp.ne.s32.totalorder %s109, %s110
      %p122 = scmp.eq.s32.totalorder %s23, 7
      %p123 = por %p121, %p122
      %p125 = scmp.ne.s32.totalorder %s110, %s124
      %p126 = scmp.eq.s32.totalorder %s23, 0
      %p127 = por %p125, %p126
      %s129 = sadd.s32 %s128, 1
      %p132 = scmp.eq.s32.totalorder %s17, 7
      %p133 = scmp.ne.s32.totalorder %s128, %s130
      %p134 = scmp.eq.s32.totalorder %s17, 0
      %p135 = por %p133, %p134
      %p136 = scmp.ne.s32.totalorder %s128, %s130
      %p137 = scmp.eq.s32.totalorder %s22, 7
      %p138 = por %p136, %p137
      %p139 = scmp.ne.s32.totalorder %s130, %s131
      %p140 = scmp.eq.s32.totalorder %s22, 0
      %p141 = por %p139, %p140
      %p142 = scmp.ne.s32.totalorder %s130, %s131
      %p143 = scmp.eq.s32.totalorder %s23, 7
      %p144 = por %p142, %p143
      %p146 = scmp.ne.s32.totalorder %s131, %s145
      %p147 = scmp.eq.s32.totalorder %s23, 0
      %p148 = por %p146, %p147
      %s150 = sadd.s32 %s149, 1
      %p153 = scmp.eq.s32.totalorder %s17, 7
      %p154 = scmp.ne.s32.totalorder %s149, %s151
      %p155 = scmp.eq.s32.totalorder %s17, 0
      %p156 = por %p154, %p155
      %p157 = scmp.ne.s32.totalorder %s149, %s151
      %p158 = scmp.eq.s32.totalorder %s22, 7
      %p159 = por %p157, %p158
      %p160 = scmp.ne.s32.totalorder %s151, %s152
      %p161 = scmp.eq.s32.totalorder %s22, 0
      %p162 = por %p160, %p161
      %p163 = scmp.ne.s32.totalorder %s151, %s152
      %p164 = scmp.eq.s32.totalorder %s23, 7
      %p165 = por %p163, %p164
      %p167 = scmp.ne.s32.totalorder %s152, %s166
      %p168 = scmp.eq.s32.totalorder %s23, 0
      %p169 = por %p167, %p168
      %s171 = sadd.s32 %s170, 1
      %p174 = scmp.eq.s32.totalorder %s17, 7
      %p175 = scmp.ne.s32.totalorder %s170, %s172
      %p176 = scmp.eq.s32.totalorder %s17, 0
      %p177 = por %p175, %p176
      %p178 = scmp.ne.s32.totalorder %s170, %s172
      %p179 = scmp.eq.s32.totalorder %s22, 7
      %p180 = por %p178, %p179
      %p181 = scmp.ne.s32.totalorder %s172, %s173
      %p182 = scmp.eq.s32.totalorder %s22, 0
      %p183 = por %p181, %p182
      %p184 = scmp.ne.s32.totalorder %s172, %s173
      %p185 = scmp.eq.s32.totalorder %s23, 7
      %p186 = por %p184, %p185
      %p188 = scmp.ne.s32.totalorder %s173, %s187
      %p189 = scmp.eq.s32.totalorder %s23, 0
      %p190 = por %p188, %p189
      %s191 = ssub.s32 %s24, %s36
      %s192 = ssub.s32 %s25, %s32
      %s193 = sor.u32 %s191, %s192
      %p194 = scmp.eq.s32.totalorder %s193, 0
      %s196 = sadd.s32 %s195, 1
      %s197 = scalar_select %p194, %s195, %s196
      %p200 = pneg %p194
      %p201 = scmp.eq.s32.totalorder %s17, 7
      %p202 = por %p200, %p201
      %p203 = scmp.ne.s32.totalorder %s195, %s198
      %p204 = scmp.eq.s32.totalorder %s17, 0
      %p205 = por %p203, %p204
      %p206 = scmp.ne.s32.totalorder %s195, %s198
      %p207 = scmp.eq.s32.totalorder %s22, 7
      %p208 = por %p206, %p207
      %p209 = scmp.ne.s32.totalorder %s198, %s199
      %p210 = scmp.eq.s32.totalorder %s22, 0
      %p211 = por %p209, %p210
      %p212 = scmp.ne.s32.totalorder %s198, %s199
      %p213 = scmp.eq.s32.totalorder %s23, 7
      %p214 = por %p212, %p213
      %p216 = scmp.ne.s32.totalorder %s199, %s215
      %p217 = scmp.eq.s32.totalorder %s23, 0
      %p218 = por %p216, %p217
      %p219 = scmp.le.s32.totalorder 1, %s17
      %p220 = scmp.lt.s32.totalorder %s17, 9
      %p221 = pnand %p219, %p220
      %p222 = pneg %p221
      // Predicated region
      $region9: #{tpu_custom_call.1} parent=5 // pred_check
        _
      $region10: #{tpu_custom_call.1} parent=5 // pred_check_branch
        %224 = sbr.rel (%p221) target = $region12
      $region11: #{tpu_custom_call.1} parent=5 // pred_region
        %s225 = ssub.s32 %s17, 1
        // Predicated region
        $region13: #{tpu_custom_call.1} parent=11 // pred_check
          %p226 = pneg %p78
        $region14: #{tpu_custom_call.1} parent=11 // pred_check_branch
          %228 = sbr.rel (%p226) target = $region16
        $region15: #{tpu_custom_call.1} parent=11 // pred_region
          _
        $region16: #{tpu_custom_call.1} parent=11 // pred_fallthru
          _
        // Predicated region
        $region17: #{tpu_custom_call.1} parent=11 // pred_check
          %p229 = pneg %p99
        $region18: #{tpu_custom_call.1} parent=11 // pred_check_branch
          %231 = sbr.rel (%p229) target = $region20
        $region19: #{tpu_custom_call.1} parent=11 // pred_region
          _
        $region20: #{tpu_custom_call.1} parent=11 // pred_fallthru
          _
        // Predicated region
        $region21: #{tpu_custom_call.1} parent=11 // pred_check
          %p232 = pneg %p120
        $region22: #{tpu_custom_call.1} parent=11 // pred_check_branch
          %234 = sbr.rel (%p232) target = $region24
        $region23: #{tpu_custom_call.1} parent=11 // pred_region
          _
        $region24: #{tpu_custom_call.1} parent=11 // pred_fallthru
          _
        // Predicated region
        $region25: #{tpu_custom_call.1} parent=11 // pred_check
          %p235 = pneg %p141
        $region26: #{tpu_custom_call.1} parent=11 // pred_check_branch
          %237 = sbr.rel (%p235) target = $region28
        $region27: #{tpu_custom_call.1} parent=11 // pred_region
          %s239 = ssub.s32 6144, 6144
          %240 = vsyncadd [#allocation5], %s239
          %s241 = sshll.u32 [#allocation4], 4
          %s242 = int_to_ptr.vmem [resolvable:$true] %s241
          %247 = dma.hbm_to_vmem [thread:$0]  %s4, 6144, %s242, [#allocation5], 128, 128, 8
        $region28: #{tpu_custom_call.1} parent=11 // pred_fallthru
          _
        // Predicated region
        $region29: #{tpu_custom_call.1} parent=11 // pred_check
          %p248 = pneg %p162
        $region30: #{tpu_custom_call.1} parent=11 // pred_check_branch
          %250 = sbr.rel (%p248) target = $region32
        $region31: #{tpu_custom_call.1} parent=11 // pred_region
          _
        $region32: #{tpu_custom_call.1} parent=11 // pred_fallthru
          _
        // Predicated region
        $region33: #{tpu_custom_call.1} parent=11 // pred_check
          %p251 = pneg %p183
        $region34: #{tpu_custom_call.1} parent=11 // pred_check_branch
          %253 = sbr.rel (%p251) target = $region36
        $region35: #{tpu_custom_call.1} parent=11 // pred_region
          _
        $region36: #{tpu_custom_call.1} parent=11 // pred_fallthru
          _
      $region12: #{tpu_custom_call.1} parent=5 // pred_fallthru
        _
      %p254 = scmp.lt.s32.totalorder %s17, 8
      // Predicated region
      $region37: #{tpu_custom_call.1} parent=5 // pred_check
        %p255 = pneg %p254
      $region38: #{tpu_custom_call.1} parent=5 // pred_check_branch
        %257 = sbr.rel (%p255) target = $region40
      $region39: #{tpu_custom_call.1} parent=5 // pred_region
        // Predicated region
        $region41: #{tpu_custom_call.1} parent=39 // pred_check
          %p258 = pneg %p51
        $region42: #{tpu_custom_call.1} parent=39 // pred_check_branch
          %260 = sbr.rel (%p258) target = $region44
        $region43: #{tpu_custom_call.1} parent=39 // pred_region
          %s261 = smul.u32 2, %s25
          %p262 = scmp.lt.s32.totalorder %s24, 1
          %s263 = scalar_select %p262, %s24, 1
          %p264 = scmp.lt.s32.totalorder %s261, 7
          %s265 = scalar_select %p264, %s261, 7
          %s266 = smul.addr %s263, 8
          %s267 = sadd.s32 %s265, %s266
          %s268 = smul.addr %s267, 8
          %s269 = scalar_lea.vmem %s0, %s268
          %s270 = smul.u32 2, %s25
        $region44: #{tpu_custom_call.1} parent=39 // pred_fallthru
          _
      $region40: #{tpu_custom_call.1} parent=5 // pred_fallthru
        _
      %p271 = scmp.le.s32.totalorder 1, %s17
      %p272 = scmp.lt.s32.totalorder %s17, 9
      %p273 = pnand %p271, %p272
      %p274 = pneg %p273
      // Predicated region
      $region45: #{tpu_custom_call.1} parent=5 // pred_check
        _
      $region46: #{tpu_custom_call.1} parent=5 // pred_check_branch
        %276 = sbr.rel (%p273) target = $region48
      $region47: #{tpu_custom_call.1} parent=5 // pred_region
        %s277 = ssub.s32 %s17, 1
        // Predicated region
        $region49: #{tpu_custom_call.1} parent=47 // pred_check
          %p278 = pneg %p141
        $region50: #{tpu_custom_call.1} parent=47 // pred_check_branch
          %280 = sbr.rel (%p278) target = $region52
        $region51: #{tpu_custom_call.1} parent=47 // pred_region
          %281 = dma.done [#allocation5], 6144
        $region52: #{tpu_custom_call.1} parent=47 // pred_fallthru
          _
        %s282 = smul.u32 2, %s27
        %p283 = scmp.lt.s32.totalorder %s26, 1
        %s284 = scalar_select %p283, %s26, 1
        %p285 = scmp.lt.s32.totalorder %s282, 7
        %s286 = scalar_select %p285, %s282, 7
        %s287 = smul.addr %s284, 8
        %s288 = sadd.s32 %s286, %s287
        %s289 = smul.addr %s288, 8
        %s290 = scalar_lea.vmem %s0, %s289
        %p291 = pneg %p57
        %p292 = pneg %p54
        %p293 = pneg %p78
        %p294 = pneg %p75
        %p295 = pneg %p99
        %p296 = pneg %p96
        %p297 = pneg %p120
        %p298 = pneg %p117
        %p299 = pneg %p141
        %p300 = pneg %p138
        %p301 = pneg %p162
        %p302 = pneg %p159
        %p303 = pneg %p183
        %p304 = pneg %p180
        %p305 = pneg %p211
        %p306 = pneg %p208
        %s307 = sand.u32 %s198, 1
        %s308 = scalar_lea.sflag [#allocation6], %s307
        %s309 = sand.u32 %s198, 1
        %s310 = smul.addr %s309, 16
        %s311 = scalar_lea.vmem [#allocation7], %s310
        %s312 = smul.u32 2, %s27
        %p313 = scmp.lt.s32.totalorder %s26, 1
        %s314 = scalar_select %p313, %s26, 1
        %p315 = scmp.lt.s32.totalorder %s312, 7
        %s316 = scalar_select %p315, %s312, 7
        %s317 = smul.addr %s314, 8
        %s318 = sadd.s32 %s316, %s317
        %s319 = smul.addr %s318, 8
        %s320 = scalar_lea.vmem %s0, %s319
        %s321 = smul.u32 2, %s27
        %s322 = smul.u32 2, %s27
        %p323 = scmp.eq.s32.totalorder %s27, 0
        // Predicated region
        $region53: #{tpu_custom_call.1} parent=47 // pred_check
          %p324 = pneg %p323
        $region54: #{tpu_custom_call.1} parent=47 // pred_check_branch
          %326 = sbr.rel (%p324) target = $region56
        $region55: #{tpu_custom_call.1} parent=47 // pred_region
          %vm327 = vcmask 27648
          %328 = vst.msk [vmem:[#allocation2] sm:$0xf] %vm327, 0.0
          %329 = vst [vmem:[#allocation3] sm:$0xf] 0.0
        $region56: #{tpu_custom_call.1} parent=47 // pred_fallthru
          _
        %v330 = vld [vmem:[%s320] sm:$0xff]
        %v331 = vld [vmem:[%s320 + $0x8] sm:$0xff]
        %v332 = vld [vmem:[%s2] sm:$0xff]
        %v334 = vcombine.high %v332, %v332
        %vm335 = vcmask 31744
        %v337 = vsel %vm335, %v330, 0
        %v340 = vsel %vm335, %v331, 0
        %vm342 = vcmask 1043456
        %v343 = vsel %vm342, %v332, 0
        %v345 = vsel %vm342, %v334, 0
        %347 = vmatprep.subr.mxu0 %v345
        %348 = vmatpush1.msra.mxu0 %v343
        %349 = vmatprep.subr.mxu0 0.0
        %350 = vmatpush1.msra.mxu0 0.0
        %351 = vmatprep.subr.mxu0 0.0
        %352 = vmatpush1.msra.mxu0 0.0
        %353 = vmatprep.subr.mxu0 0.0
        %354 = vmatpush1.msra.mxu0 0.0
        %355 = vmatprep.subr.mxu0 0.0
        %356 = vmatpush1.msra.mxu0 0.0
        %357 = vmatprep.subr.mxu0 0.0
        %358 = vmatpush1.msra.mxu0 0.0
        %359 = vmatprep.subr.mxu0 0.0
        %360 = vmatpush1.msra.mxu0 0.0
        %361 = vmatprep.subr.mxu0 0.0
        %362 = vmatpush1.msra.mxu0 0.0
        %363 = vmatprep.subr.mxu0 0.0
        %364 = vmatpush1.msra.mxu0 0.0
        %365 = vmatprep.subr.mxu0 0.0
        %366 = vmatpush1.msra.mxu0 0.0
        %367 = vmatprep.subr.mxu0 0.0
        %368 = vmatpush1.msra.mxu0 0.0
        %369 = vmatprep.subr.mxu0 0.0
        %370 = vmatpush1.msra.mxu0 0.0
        %371 = vmatprep.subr.mxu0 0.0
        %372 = vmatpush1.msra.mxu0 0.0
        %373 = vmatprep.subr.mxu0 0.0
        %374 = vmatpush1.msra.mxu0 0.0
        %375 = vmatprep.subr.mxu0 0.0
        %376 = vmatpush1.msra.mxu0 0.0
        %377 = vmatprep.subr.mxu0 0.0
        %378 = vmatpush1.msra.mxu0 0.0
        %379 = vmatprep.subr.mxu0 0.0
        %380 = vmatpush1.msra.mxu0 0.0
        %381 = vmatprep.subr.mxu0 0.0
        %382 = vmatpush1.msra.mxu0 0.0
        %383 = vmatprep.subr.mxu0 0.0
        %384 = vmatpush1.msra.mxu0 0.0
        %385 = vmatprep.subr.mxu0 0.0
        %386 = vmatpush1.msra.mxu0 0.0
        %387 = vmatprep.subr.mxu0 0.0
        %388 = vmatpush1.msra.mxu0 0.0
        %389 = vmatprep.subr.mxu0 0.0
        %390 = vmatpush1.msra.mxu0 0.0
        %391 = vmatprep.subr.mxu0 0.0
        %392 = vmatpush1.msra.mxu0 0.0
        %393 = vmatprep.subr.mxu0 0.0
        %394 = vmatpush1.msra.mxu0 0.0
        %395 = vmatprep.subr.mxu0 0.0
        %396 = vmatpush1.msra.mxu0 0.0
        %397 = vmatprep.subr.mxu0 0.0
        %398 = vmatpush1.msra.mxu0 0.0
        %399 = vmatprep.subr.mxu0 0.0
        %400 = vmatpush1.msra.mxu0 0.0
        %401 = vmatprep.subr.mxu0 0.0
        %402 = vmatpush1.msra.mxu0 0.0
        %403 = vmatprep.subr.mxu0 0.0
        %404 = vmatpush1.msra.mxu0 0.0
        %405 = vmatprep.subr.mxu0 0.0
        %406 = vmatpush1.msra.mxu0 0.0
        %407 = vmatprep.subr.mxu0 0.0
        %408 = vmatpush1.msra.mxu0 0.0
        %409 = vmatprep.subr.mxu0 0.0
        %410 = vmatpush1.msra.mxu0 0.0
        %411 = vmatprep.mubr.f32.mxu0 0.0
        %412 = vmatmul.mubr.f32.gmra.mrb[0].mxu0 %v337
        %v413 = vpop.f32.mrb[0].mxu0
        %v414 = vadd.f32 0.0, %v413
        %v415 = vpop.f32.mrb[0].mxu0
        %v416 = vadd.f32 0.0, %v415
        %417 = vmatprep.mubr.f32.mxu0 0.0
        %418 = vmatmul.mubr.f32.gmra.mrb[0].mxu0 %v340
        %v419 = vpop.f32.mrb[0].mxu0
        %v420 = vadd.f32 0.0, %v419
        %v421 = vpop.f32.mrb[0].mxu0
        %v422 = vadd.f32 0.0, %v421
        %423 = vdwg.mxu0
        %v424 = vld [vmem:[%s6] sm:$0x1]
        %v426 = vlaneseq
        %v427 = vshrl.u32 %v426, 7
        %v428 = vsub.s32 0, %v427
        %v429 = vrot.slane %v424, %v428
        %v431 = vadd.f32 %v416, %v429
        %v432 = vadd.f32 %v422, %v429
        %v433 = vld [vmem:[#allocation2] sm:$0xf]
        %v434 = vrot.slane %v330, 4
        %v435 = vrot.slane %v331, 4
        %v436 = vsel %vm342, %v434, %v435
        %v439 = vsel %vm342, %v433, %v434
        %v440 = vld [vmem:[%s1] sm:$0xf]
        %v442 = vsel %vm335, %v439, 0
        %v444 = vsel %vm335, %v436, 0
        %v447 = vsel %vm342, %v440, 0
        %449 = vmatprep.subr.mxu0 0.0
        %450 = vmatpush1.msra.mxu0 %v447
        %451 = vmatprep.subr.mxu0 0.0
        %452 = vmatpush1.msra.mxu0 0.0
        %453 = vmatprep.subr.mxu0 0.0
        %454 = vmatpush1.msra.mxu0 0.0
        %455 = vmatprep.subr.mxu0 0.0
        %456 = vmatpush1.msra.mxu0 0.0
        %457 = vmatprep.subr.mxu0 0.0
        %458 = vmatpush1.msra.mxu0 0.0
        %459 = vmatprep.subr.mxu0 0.0
        %460 = vmatpush1.msra.mxu0 0.0
        %461 = vmatprep.subr.mxu0 0.0
        %462 = vmatpush1.msra.mxu0 0.0
        %463 = vmatprep.subr.mxu0 0.0
        %464 = vmatpush1.msra.mxu0 0.0
        %465 = vmatprep.subr.mxu0 0.0
        %466 = vmatpush1.msra.mxu0 0.0
        %467 = vmatprep.subr.mxu0 0.0
        %468 = vmatpush1.msra.mxu0 0.0
        %469 = vmatprep.subr.mxu0 0.0
        %470 = vmatpush1.msra.mxu0 0.0
        %471 = vmatprep.subr.mxu0 0.0
        %472 = vmatpush1.msra.mxu0 0.0
        %473 = vmatprep.subr.mxu0 0.0
        %474 = vmatpush1.msra.mxu0 0.0
        %475 = vmatprep.subr.mxu0 0.0
        %476 = vmatpush1.msra.mxu0 0.0
        %477 = vmatprep.subr.mxu0 0.0
        %478 = vmatpush1.msra.mxu0 0.0
        %479 = vmatprep.subr.mxu0 0.0
        %480 = vmatpush1.msra.mxu0 0.0
        %481 = vmatprep.subr.mxu0 0.0
        %482 = vmatpush1.msra.mxu0 0.0
        %483 = vmatprep.subr.mxu0 0.0
        %484 = vmatpush1.msra.mxu0 0.0
        %485 = vmatprep.subr.mxu0 0.0
        %486 = vmatpush1.msra.mxu0 0.0
        %487 = vmatprep.subr.mxu0 0.0
        %488 = vmatpush1.msra.mxu0 0.0
        %489 = vmatprep.subr.mxu0 0.0
        %490 = vmatpush1.msra.mxu0 0.0
        %491 = vmatprep.subr.mxu0 0.0
        %492 = vmatpush1.msra.mxu0 0.0
        %493 = vmatprep.subr.mxu0 0.0
        %494 = vmatpush1.msra.mxu0 0.0
        %495 = vmatprep.subr.mxu0 0.0
        %496 = vmatpush1.msra.mxu0 0.0
        %497 = vmatprep.subr.mxu0 0.0
        %498 = vmatpush1.msra.mxu0 0.0
        %499 = vmatprep.subr.mxu0 0.0
        %500 = vmatpush1.msra.mxu0 0.0
        %501 = vmatprep.subr.mxu0 0.0
        %502 = vmatpush1.msra.mxu0 0.0
        %503 = vmatprep.subr.mxu0 0.0
        %504 = vmatpush1.msra.mxu0 0.0
        %505 = vmatprep.subr.mxu0 0.0
        %506 = vmatpush1.msra.mxu0 0.0
        %507 = vmatprep.subr.mxu0 0.0
        %508 = vmatpush1.msra.mxu0 0.0
        %509 = vmatprep.subr.mxu0 0.0
        %510 = vmatpush1.msra.mxu0 0.0
        %511 = vmatprep.subr.mxu0 0.0
        %512 = vmatpush1.msra.mxu0 0.0
        %513 = vmatprep.mubr.f32.mxu0 0.0
        %514 = vmatmul.mubr.f32.gmra.mrb[0].mxu0 %v442
        %v515 = vpop.f32.mrb[0].mxu0
        %v516 = vadd.f32 0.0, %v515
        %v517 = vpop.f32.mrb[0].mxu0
        %518 = vmatprep.mubr.f32.mxu0 0.0
        %519 = vmatmul.mubr.f32.gmra.mrb[0].mxu0 %v444
        %v520 = vpop.f32.mrb[0].mxu0
        %v521 = vadd.f32 0.0, %v520
        %v522 = vpop.f32.mrb[0].mxu0
        %523 = vdwg.mxu0
        %v524 = vadd.f32 %v414, %v516
        %v525 = vadd.f32 %v420, %v521
        %s526 = scalar_lea.vmem %s1, 4
        %v527 = vld [vmem:[%s526] sm:$0xf]
        %vm528 = vcmask 1045504
        %v529 = vrot.slane %v439, 2
        %v530 = vrot.slane %v436, 2
        %v531 = vsel %vm528, %v529, %v530
        %v532 = vrot.slane %v435, 2
        %v533 = vsel %vm528, %v530, %v532
        %v534 = vsel %vm335, %v531, 0
        %v536 = vsel %vm335, %v533, 0
        %v539 = vsel %vm342, %v527, 0
        %541 = vmatprep.subr.mxu0 0.0
        %542 = vmatpush1.msra.mxu0 %v539
        %543 = vmatprep.subr.mxu0 0.0
        %544 = vmatpush1.msra.mxu0 0.0
        %545 = vmatprep.subr.mxu0 0.0
        %546 = vmatpush1.msra.mxu0 0.0
        %547 = vmatprep.subr.mxu0 0.0
        %548 = vmatpush1.msra.mxu0 0.0
        %549 = vmatprep.subr.mxu0 0.0
        %550 = vmatpush1.msra.mxu0 0.0
        %551 = vmatprep.subr.mxu0 0.0
        %552 = vmatpush1.msra.mxu0 0.0
        %553 = vmatprep.subr.mxu0 0.0
        %554 = vmatpush1.msra.mxu0 0.0
        %555 = vmatprep.subr.mxu0 0.0
        %556 = vmatpush1.msra.mxu0 0.0
        %557 = vmatprep.subr.mxu0 0.0
        %558 = vmatpush1.msra.mxu0 0.0
        %559 = vmatprep.subr.mxu0 0.0
        %560 = vmatpush1.msra.mxu0 0.0
        %561 = vmatprep.subr.mxu0 0.0
        %562 = vmatpush1.msra.mxu0 0.0
        %563 = vmatprep.subr.mxu0 0.0
        %564 = vmatpush1.msra.mxu0 0.0
        %565 = vmatprep.subr.mxu0 0.0
        %566 = vmatpush1.msra.mxu0 0.0
        %567 = vmatprep.subr.mxu0 0.0
        %568 = vmatpush1.msra.mxu0 0.0
        %569 = vmatprep.subr.mxu0 0.0
        %570 = vmatpush1.msra.mxu0 0.0
        %571 = vmatprep.subr.mxu0 0.0
        %572 = vmatpush1.msra.mxu0 0.0
        %573 = vmatprep.subr.mxu0 0.0
        %574 = vmatpush1.msra.mxu0 0.0
        %575 = vmatprep.subr.mxu0 0.0
        %576 = vmatpush1.msra.mxu0 0.0
        %577 = vmatprep.subr.mxu0 0.0
        %578 = vmatpush1.msra.mxu0 0.0
        %579 = vmatprep.subr.mxu0 0.0
        %580 = vmatpush1.msra.mxu0 0.0
        %581 = vmatprep.subr.mxu0 0.0
        %582 = vmatpush1.msra.mxu0 0.0
        %583 = vmatprep.subr.mxu0 0.0
        %584 = vmatpush1.msra.mxu0 0.0
        %585 = vmatprep.subr.mxu0 0.0
        %586 = vmatpush1.msra.mxu0 0.0
        %587 = vmatprep.subr.mxu0 0.0
        %588 = vmatpush1.msra.mxu0 0.0
        %589 = vmatprep.subr.mxu0 0.0
        %590 = vmatpush1.msra.mxu0 0.0
        %591 = vmatprep.subr.mxu0 0.0
        %592 = vmatpush1.msra.mxu0 0.0
        %593 = vmatprep.subr.mxu0 0.0
        %594 = vmatpush1.msra.mxu0 0.0
        %595 = vmatprep.subr.mxu0 0.0
        %596 = vmatpush1.msra.mxu0 0.0
        %597 = vmatprep.subr.mxu0 0.0
        %598 = vmatpush1.msra.mxu0 0.0
        %599 = vmatprep.subr.mxu0 0.0
        %600 = vmatpush1.msra.mxu0 0.0
        %601 = vmatprep.subr.mxu0 0.0
        %602 = vmatpush1.msra.mxu0 0.0
        %603 = vmatprep.subr.mxu0 0.0
        %604 = vmatpush1.msra.mxu0 0.0
        %605 = vmatprep.mubr.f32.mxu0 0.0
        %606 = vmatmul.mubr.f32.gmra.mrb[0].mxu0 %v534
        %v607 = vpop.f32.mrb[0].mxu0
        %v608 = vadd.f32 0.0, %v607
        %v609 = vpop.f32.mrb[0].mxu0
        %610 = vmatprep.mubr.f32.mxu0 0.0
        %611 = vmatmul.mubr.f32.gmra.mrb[0].mxu0 %v536
        %v612 = vpop.f32.mrb[0].mxu0
        %v613 = vadd.f32 0.0, %v612
        %v614 = vpop.f32.mrb[0].mxu0
        %615 = vdwg.mxu0
        %v616 = vadd.f32 %v524, %v608
        %v617 = vadd.f32 %v525, %v613
        %v618 = vld [vmem:[%s3] sm:$0x1]
        %v620 = vlaneseq
        %v621 = vshrl.u32 %v620, 7
        %v622 = vsub.s32 0, %v621
        %v623 = vrot.slane %v618, %v622
        %v625 = vadd.f32 %v616, %v623
        %v626 = vadd.f32 %v617, %v623
        %v627 = vmax.f32 %v625, 0.0
        %v628 = vmax.f32 %v626, 0.0
        %v629 = vld [vmem:[#allocation3] sm:$0xf]
        %v632 = vrot.slane %v627, 4
        %v633 = vrot.slane %v628, 4
        %v634 = vsel %vm342, %v632, %v633
        %v638 = vsel %vm342, %v629, %v632
        %s639 = scalar_lea.vmem [#allocation4], 256
        %v640 = vld [vmem:[%s639] sm:$0xff]
        %v641 = vld [vmem:[%s639 + $0x8] sm:$0xff]
        %v642 = vld [vmem:[%s639 + $0x10] sm:$0xff]
        %v643 = vld [vmem:[%s639 + $0x18] sm:$0xff]
        %v644 = vld [vmem:[%s639 + $0x20] sm:$0xff]
        %v645 = vld [vmem:[%s639 + $0x28] sm:$0xff]
        %v646 = vld [vmem:[%s639 + $0x30] sm:$0xff]
        %v647 = vld [vmem:[%s639 + $0x38] sm:$0xff]
        %v648 = vld [vmem:[%s639 + $0x40] sm:$0xff]
        %v649 = vld [vmem:[%s639 + $0x48] sm:$0xff]
        %v650 = vld [vmem:[%s639 + $0x50] sm:$0xff]
        %v651 = vld [vmem:[%s639 + $0x58] sm:$0xff]
        %v652 = vld [vmem:[%s639 + $0x60] sm:$0xff]
        %v653 = vld [vmem:[%s639 + $0x68] sm:$0xff]
        %v654 = vld [vmem:[%s639 + $0x70] sm:$0xff]
        %v655 = vld [vmem:[%s639 + $0x78] sm:$0xff]
        %v656 = vld [vmem:[#allocation4] sm:$0xff]
        %v657 = vld [vmem:[#allocation4 + $0x8] sm:$0xff]
        %v658 = vld [vmem:[#allocation4 + $0x10] sm:$0xff]
        %v659 = vld [vmem:[#allocation4 + $0x18] sm:$0xff]
        %v660 = vld [vmem:[#allocation4 + $0x20] sm:$0xff]
        %v661 = vld [vmem:[#allocation4 + $0x28] sm:$0xff]
        %v662 = vld [vmem:[#allocation4 + $0x30] sm:$0xff]
        %v663 = vld [vmem:[#allocation4 + $0x38] sm:$0xff]
        %v664 = vld [vmem:[#allocation4 + $0x40] sm:$0xff]
        %v665 = vld [vmem:[#allocation4 + $0x48] sm:$0xff]
        %v666 = vld [vmem:[#allocation4 + $0x50] sm:$0xff]
        %v667 = vld [vmem:[#allocation4 + $0x58] sm:$0xff]
        %v668 = vld [vmem:[#allocation4 + $0x60] sm:$0xff]
        %v669 = vld [vmem:[#allocation4 + $0x68] sm:$0xff]
        %v670 = vld [vmem:[#allocation4 + $0x70] sm:$0xff]
        %v671 = vld [vmem:[#allocation4 + $0x78] sm:$0xff]
        %672 = vmatprep.subr.mxu0 0.0
        %673 = vmatpush1.msra.mxu0 %v656
        %674 = vmatprep.subr.mxu0 0.0
        %675 = vmatpush1.msra.mxu0 %v657
        %676 = vmatprep.subr.mxu0 0.0
        %677 = vmatpush1.msra.mxu0 %v658
        %678 = vmatprep.subr.mxu0 0.0
        %679 = vmatpush1.msra.mxu0 %v659
        %680 = vmatprep.subr.mxu0 0.0
        %681 = vmatpush1.msra.mxu0 %v660
        %682 = vmatprep.subr.mxu0 0.0
        %683 = vmatpush1.msra.mxu0 %v661
        %684 = vmatprep.subr.mxu0 0.0
        %685 = vmatpush1.msra.mxu0 %v662
        %686 = vmatprep.subr.mxu0 0.0
        %687 = vmatpush1.msra.mxu0 %v663
        %688 = vmatprep.subr.mxu0 0.0
        %689 = vmatpush1.msra.mxu0 %v664
        %690 = vmatprep.subr.mxu0 0.0
        %691 = vmatpush1.msra.mxu0 %v665
        %692 = vmatprep.subr.mxu0 0.0
        %693 = vmatpush1.msra.mxu0 %v666
        %694 = vmatprep.subr.mxu0 0.0
        %695 = vmatpush1.msra.mxu0 %v667
        %696 = vmatprep.subr.mxu0 0.0
        %697 = vmatpush1.msra.mxu0 %v668
        %698 = vmatprep.subr.mxu0 0.0
        %699 = vmatpush1.msra.mxu0 %v669
        %700 = vmatprep.subr.mxu0 0.0
        %701 = vmatpush1.msra.mxu0 %v670
        %702 = vmatprep.subr.mxu0 0.0
        %703 = vmatpush1.msra.mxu0 %v671
        %704 = vmatprep.subr.mxu0 0.0
        %705 = vmatpush1.msra.mxu0 0.0
        %706 = vmatprep.subr.mxu0 0.0
        %707 = vmatpush1.msra.mxu0 0.0
        %708 = vmatprep.subr.mxu0 0.0
        %709 = vmatpush1.msra.mxu0 0.0
        %710 = vmatprep.subr.mxu0 0.0
        %711 = vmatpush1.msra.mxu0 0.0
        %712 = vmatprep.subr.mxu0 0.0
        %713 = vmatpush1.msra.mxu0 0.0
        %714 = vmatprep.subr.mxu0 0.0
        %715 = vmatpush1.msra.mxu0 0.0
        %716 = vmatprep.subr.mxu0 0.0
        %717 = vmatpush1.msra.mxu0 0.0
        %718 = vmatprep.subr.mxu0 0.0
        %719 = vmatpush1.msra.mxu0 0.0
        %720 = vmatprep.subr.mxu0 0.0
        %721 = vmatpush1.msra.mxu0 0.0
        %722 = vmatprep.subr.mxu0 0.0
        %723 = vmatpush1.msra.mxu0 0.0
        %724 = vmatprep.subr.mxu0 0.0
        %725 = vmatpush1.msra.mxu0 0.0
        %726 = vmatprep.subr.mxu0 0.0
        %727 = vmatpush1.msra.mxu0 0.0
        %728 = vmatprep.subr.mxu0 0.0
        %729 = vmatpush1.msra.mxu0 0.0
        %730 = vmatprep.subr.mxu0 0.0
        %731 = vmatpush1.msra.mxu0 0.0
        %732 = vmatprep.subr.mxu0 0.0
        %733 = vmatpush1.msra.mxu0 0.0
        %734 = vmatprep.subr.mxu0 0.0
        %735 = vmatpush1.msra.mxu0 0.0
        %736 = vmatprep.mubr.f32.mxu0 0.0
        %737 = vmatmul.mubr.f32.gmra.mrb[0].mxu0 %v638
        %v738 = vpop.f32.mrb[0].mxu0
        %v739 = vadd.f32 0.0, %v738
        %v740 = vpop.f32.mrb[0].mxu0
        %741 = vmatprep.mubr.f32.mxu0 0.0
        %742 = vmatmul.mubr.f32.gmra.mrb[0].mxu0 %v634
        %v743 = vpop.f32.mrb[0].mxu0
        %v744 = vadd.f32 0.0, %v743
        %v745 = vpop.f32.mrb[0].mxu0
        %746 = vdwg.mxu0
        %747 = vmatprep.subr.mxu0 0.0
        %748 = vmatpush1.msra.mxu0 %v640
        %749 = vmatprep.subr.mxu0 0.0
        %750 = vmatpush1.msra.mxu0 %v641
        %751 = vmatprep.subr.mxu0 0.0
        %752 = vmatpush1.msra.mxu0 %v642
        %753 = vmatprep.subr.mxu0 0.0
        %754 = vmatpush1.msra.mxu0 %v643
        %755 = vmatprep.subr.mxu0 0.0
        %756 = vmatpush1.msra.mxu0 %v644
        %757 = vmatprep.subr.mxu0 0.0
        %758 = vmatpush1.msra.mxu0 %v645
        %759 = vmatprep.subr.mxu0 0.0
        %760 = vmatpush1.msra.mxu0 %v646
        %761 = vmatprep.subr.mxu0 0.0
        %762 = vmatpush1.msra.mxu0 %v647
        %763 = vmatprep.subr.mxu0 0.0
        %764 = vmatpush1.msra.mxu0 %v648
        %765 = vmatprep.subr.mxu0 0.0
        %766 = vmatpush1.msra.mxu0 %v649
        %767 = vmatprep.subr.mxu0 0.0
        %768 = vmatpush1.msra.mxu0 %v650
        %769 = vmatprep.subr.mxu0 0.0
        %770 = vmatpush1.msra.mxu0 %v651
        %771 = vmatprep.subr.mxu0 0.0
        %772 = vmatpush1.msra.mxu0 %v652
        %773 = vmatprep.subr.mxu0 0.0
        %774 = vmatpush1.msra.mxu0 %v653
        %775 = vmatprep.subr.mxu0 0.0
        %776 = vmatpush1.msra.mxu0 %v654
        %777 = vmatprep.subr.mxu0 0.0
        %778 = vmatpush1.msra.mxu0 %v655
        %779 = vmatprep.subr.mxu0 0.0
        %780 = vmatpush1.msra.mxu0 0.0
        %781 = vmatprep.subr.mxu0 0.0
        %782 = vmatpush1.msra.mxu0 0.0
        %783 = vmatprep.subr.mxu0 0.0
        %784 = vmatpush1.msra.mxu0 0.0
        %785 = vmatprep.subr.mxu0 0.0
        %786 = vmatpush1.msra.mxu0 0.0
        %787 = vmatprep.subr.mxu0 0.0
        %788 = vmatpush1.msra.mxu0 0.0
        %789 = vmatprep.subr.mxu0 0.0
        %790 = vmatpush1.msra.mxu0 0.0
        %791 = vmatprep.subr.mxu0 0.0
        %792 = vmatpush1.msra.mxu0 0.0
        %793 = vmatprep.subr.mxu0 0.0
        %794 = vmatpush1.msra.mxu0 0.0
        %795 = vmatprep.subr.mxu0 0.0
        %796 = vmatpush1.msra.mxu0 0.0
        %797 = vmatprep.subr.mxu0 0.0
        %798 = vmatpush1.msra.mxu0 0.0
        %799 = vmatprep.subr.mxu0 0.0
        %800 = vmatpush1.msra.mxu0 0.0
        %801 = vmatprep.subr.mxu0 0.0
        %802 = vmatpush1.msra.mxu0 0.0
        %803 = vmatprep.subr.mxu0 0.0
        %804 = vmatpush1.msra.mxu0 0.0
        %805 = vmatprep.subr.mxu0 0.0
        %806 = vmatpush1.msra.mxu0 0.0
        %807 = vmatprep.subr.mxu0 0.0
        %808 = vmatpush1.msra.mxu0 0.0
        %809 = vmatprep.subr.mxu0 0.0
        %810 = vmatpush1.msra.mxu0 0.0
        %811 = vmatprep.mubr.f32.mxu0 0.0
        %812 = vmatmul.mubr.f32.gmra.mrb[0].mxu0 %v627
        %v813 = vpop.f32.mrb[0].mxu0
        %v814 = vadd.f32 %v739, %v813
        %v815 = vpop.f32.mrb[0].mxu0
        %816 = vmatprep.mubr.f32.mxu0 0.0
        %817 = vmatmul.mubr.f32.gmra.mrb[0].mxu0 %v628
        %v818 = vpop.f32.mrb[0].mxu0
        %v819 = vadd.f32 %v744, %v818
        %v820 = vpop.f32.mrb[0].mxu0
        %821 = vdwg.mxu0
        %s822 = scalar_lea.vmem [#allocation4], 128
        %v823 = vld [vmem:[%s822] sm:$0xff]
        %v824 = vld [vmem:[%s822 + $0x8] sm:$0xff]
        %v825 = vld [vmem:[%s822 + $0x10] sm:$0xff]
        %v826 = vld [vmem:[%s822 + $0x18] sm:$0xff]
        %v827 = vld [vmem:[%s822 + $0x20] sm:$0xff]
        %v828 = vld [vmem:[%s822 + $0x28] sm:$0xff]
        %v829 = vld [vmem:[%s822 + $0x30] sm:$0xff]
        %v830 = vld [vmem:[%s822 + $0x38] sm:$0xff]
        %v831 = vld [vmem:[%s822 + $0x40] sm:$0xff]
        %v832 = vld [vmem:[%s822 + $0x48] sm:$0xff]
        %v833 = vld [vmem:[%s822 + $0x50] sm:$0xff]
        %v834 = vld [vmem:[%s822 + $0x58] sm:$0xff]
        %v835 = vld [vmem:[%s822 + $0x60] sm:$0xff]
        %v836 = vld [vmem:[%s822 + $0x68] sm:$0xff]
        %v837 = vld [vmem:[%s822 + $0x70] sm:$0xff]
        %v838 = vld [vmem:[%s822 + $0x78] sm:$0xff]
        %v840 = vrot.slane %v638, 2
        %v841 = vrot.slane %v634, 2
        %v842 = vsel %vm528, %v840, %v841
        %v843 = vrot.slane %v633, 2
        %v844 = vsel %vm528, %v841, %v843
        %847 = vmatprep.subr.mxu0 0.0
        %848 = vmatpush1.msra.mxu0 %v823
        %849 = vmatprep.subr.mxu0 0.0
        %850 = vmatpush1.msra.mxu0 %v824
        %851 = vmatprep.subr.mxu0 0.0
        %852 = vmatpush1.msra.mxu0 %v825
        %853 = vmatprep.subr.mxu0 0.0
        %854 = vmatpush1.msra.mxu0 %v826
        %855 = vmatprep.subr.mxu0 0.0
        %856 = vmatpush1.msra.mxu0 %v827
        %857 = vmatprep.subr.mxu0 0.0
        %858 = vmatpush1.msra.mxu0 %v828
        %859 = vmatprep.subr.mxu0 0.0
        %860 = vmatpush1.msra.mxu0 %v829
        %861 = vmatprep.subr.mxu0 0.0
        %862 = vmatpush1.msra.mxu0 %v830
        %863 = vmatprep.subr.mxu0 0.0
        %864 = vmatpush1.msra.mxu0 %v831
        %865 = vmatprep.subr.mxu0 0.0
        %866 = vmatpush1.msra.mxu0 %v832
        %867 = vmatprep.subr.mxu0 0.0
        %868 = vmatpush1.msra.mxu0 %v833
        %869 = vmatprep.subr.mxu0 0.0
        %870 = vmatpush1.msra.mxu0 %v834
        %871 = vmatprep.subr.mxu0 0.0
        %872 = vmatpush1.msra.mxu0 %v835
        %873 = vmatprep.subr.mxu0 0.0
        %874 = vmatpush1.msra.mxu0 %v836
        %875 = vmatprep.subr.mxu0 0.0
        %876 = vmatpush1.msra.mxu0 %v837
        %877 = vmatprep.subr.mxu0 0.0
        %878 = vmatpush1.msra.mxu0 %v838
        %879 = vmatprep.subr.mxu0 0.0
        %880 = vmatpush1.msra.mxu0 0.0
        %881 = vmatprep.subr.mxu0 0.0
        %882 = vmatpush1.msra.mxu0 0.0
        %883 = vmatprep.subr.mxu0 0.0
        %884 = vmatpush1.msra.mxu0 0.0
        %885 = vmatprep.subr.mxu0 0.0
        %886 = vmatpush1.msra.mxu0 0.0
        %887 = vmatprep.subr.mxu0 0.0
        %888 = vmatpush1.msra.mxu0 0.0
        %889 = vmatprep.subr.mxu0 0.0
        %890 = vmatpush1.msra.mxu0 0.0
        %891 = vmatprep.subr.mxu0 0.0
        %892 = vmatpush1.msra.mxu0 0.0
        %893 = vmatprep.subr.mxu0 0.0
        %894 = vmatpush1.msra.mxu0 0.0
        %895 = vmatprep.subr.mxu0 0.0
        %896 = vmatpush1.msra.mxu0 0.0
        %897 = vmatprep.subr.mxu0 0.0
        %898 = vmatpush1.msra.mxu0 0.0
        %899 = vmatprep.subr.mxu0 0.0
        %900 = vmatpush1.msra.mxu0 0.0
        %901 = vmatprep.subr.mxu0 0.0
        %902 = vmatpush1.msra.mxu0 0.0
        %903 = vmatprep.subr.mxu0 0.0
        %904 = vmatpush1.msra.mxu0 0.0
        %905 = vmatprep.subr.mxu0 0.0
        %906 = vmatpush1.msra.mxu0 0.0
        %907 = vmatprep.subr.mxu0 0.0
        %908 = vmatpush1.msra.mxu0 0.0
        %909 = vmatprep.subr.mxu0 0.0
        %910 = vmatpush1.msra.mxu0 0.0
        %911 = vmatprep.mubr.f32.mxu0 0.0
        %912 = vmatmul.mubr.f32.gmra.mrb[0].mxu0 %v842
        %v913 = vpop.f32.mrb[0].mxu0
        %v914 = vadd.f32 0.0, %v913
        %v915 = vpop.f32.mrb[0].mxu0
        %916 = vmatprep.mubr.f32.mxu0 0.0
        %917 = vmatmul.mubr.f32.gmra.mrb[0].mxu0 %v844
        %v918 = vpop.f32.mrb[0].mxu0
        %v919 = vadd.f32 0.0, %v918
        %v920 = vpop.f32.mrb[0].mxu0
        %921 = vdwg.mxu0
        %v922 = vadd.f32 %v814, %v914
        %v923 = vadd.f32 %v819, %v919
        %v924 = vld [vmem:[%s5] sm:$0x1]
        %v926 = vlaneseq
        %v927 = vshrl.u32 %v926, 7
        %v928 = vsub.s32 0, %v927
        %v929 = vrot.slane %v924, %v928
        %v931 = vadd.f32 %v922, %v929
        %v932 = vadd.f32 %v923, %v929
        %v933 = vmax.f32 %v931, 0.0
        %v934 = vmax.f32 %v932, 0.0
        %v935 = vadd.f32 %v933, %v431
        %v936 = vadd.f32 %v934, %v432
        %v937 = vmax.f32 %v935, 0.0
        %v938 = vmax.f32 %v936, 0.0
        %939 = vst [vmem:[%s311] sm:$0xff] %v937
        %940 = vst [vmem:[%s311 + $0x8] sm:$0xff] %v938
        %vm941 = vcmask 27648
        %942 = vst.msk [vmem:[#allocation2] sm:$0xf] %vm941, %v435
        %943 = vst [vmem:[#allocation3] sm:$0xf] %v633
        %s944 = sand.u32 %s198, 1
        %s945 = scalar_lea.sflag [#allocation6], %s944
        %s946 = sand.u32 %s198, 1
        %s947 = smul.addr %s946, 16
        %s948 = scalar_lea.vmem [#allocation7], %s947
        // Predicated region
        $region57: #{tpu_custom_call.1} parent=47 // pred_check
          %p949 = pneg %p208
        $region58: #{tpu_custom_call.1} parent=47 // pred_check_branch
          %951 = sbr.rel (%p949) target = $region60
        $region59: #{tpu_custom_call.1} parent=47 // pred_region
          %s952 = smul.u32 2, %s27
          %s954 = ssub.s32 256, 256
          %955 = vsyncadd %s945, %s954
          %s956 = smul.addr %s26, 8
          %s957 = sadd.s32 %s952, %s956
          %s958 = smul.addr %s957, 128
          %s959 = scalar_lea.hbm %s7, %s958
          %s960 = sshll.u32 %s948, 4
          %s961 = int_to_ptr.vmem [resolvable:$true] %s960
          %966 = dma.vmem_to_hbm [thread:$0]  %s961, 256, %s959, %s945, 128, 128, 8
        $region60: #{tpu_custom_call.1} parent=47 // pred_fallthru
          _
      $region48: #{tpu_custom_call.1} parent=5 // pred_fallthru
        _
      %p967 = scmp.le.s32.totalorder 2, %s17
      // Predicated region
      $region61: #{tpu_custom_call.1} parent=5 // pred_check
        %p968 = pneg %p967
      $region62: #{tpu_custom_call.1} parent=5 // pred_check_branch
        %970 = sbr.rel (%p968) target = $region64
      $region63: #{tpu_custom_call.1} parent=5 // pred_region
        %s971 = ssub.s32 %s17, 2
        // Predicated region
        $region65: #{tpu_custom_call.1} parent=63 // pred_check
          %p972 = pneg %p214
        $region66: #{tpu_custom_call.1} parent=63 // pred_check_branch
          %974 = sbr.rel (%p972) target = $region68
        $region67: #{tpu_custom_call.1} parent=63 // pred_region
          %s975 = sand.u32 %s199, 1
          %s976 = scalar_lea.sflag [#allocation6], %s975
          %s977 = sand.u32 %s199, 1
          %s978 = smul.addr %s977, 16
          %s979 = scalar_lea.vmem [#allocation7], %s978
          %980 = dma.done %s976, 256
        $region68: #{tpu_custom_call.1} parent=63 // pred_fallthru
          _
      $region64: #{tpu_custom_call.1} parent=5 // pred_fallthru
        _
    $region6: #{tpu_custom_call.1} parent=1 // loop_footer
      %s21 = sadd.s32 1, %s17
    $region7: #{tpu_custom_call.1} parent=1 // loop_footer_branch
      %16 = sbr.rel target = $region3
    $region8: #{tpu_custom_call.1} parent=1 // loop_exit
      _
    %981 = vsyncpa [#allocation5], 1
    %s982 = scalar_lea.sflag [#allocation5], 1
    %983 = vsyncpa %s982, 1
    %984 = vsyncpa [#allocation6], 1
    %s985 = scalar_lea.sflag [#allocation6], 1
    %986 = vsyncpa %s985, 1

</llo_original>
